<compile_context>
chip_gen: v7x
topology: tpu7x:2x2x1
jax: 0.10.0
libtpu: 0.0.40
codegen_flags: <defaults>
</compile_context>

<pallas_src>
import functools
import math

import jax
import jax.numpy as jnp
from jax import lax
from jax.experimental import pallas as pl
from jax.experimental.pallas import tpu as pltpu


def _cdiv(a, b):
    return -(-a // b)


def _round_up(x, m):
    return _cdiv(x, m) * m


def _conv1d_kernel(x_ref, xl_ref, xr_ref, w_ref, b_ref, o_ref, xw_ref, *,
                   kernel_size, dilation, pad, halo_lanes, length):
    # x_ref  : (1, C_in, lt)    main input tile  x[:, l*lt : l*lt+lt]
    # xl_ref : (1, C_in, H)     left  halo       x[:, l*lt-H : l*lt]       (clamped; tile 0 = left zero pad)
    # xr_ref : (1, C_in, H)     right halo       x[:, (l+1)*lt : +H]       (clamped; masked past `length`)
    # w_ref  : (K, C_out, C_in) weight-normalized weights, VMEM-resident
    # b_ref  : (C_out, 1)       bias, VMEM-resident
    # o_ref  : (1, C_out, lt)   output tile
    # xw_ref : (C_in, H+lt+H)   VMEM scratch holding the contiguous input window
    H = halo_lanes
    lt = x_ref.shape[-1]
    c_in = x_ref.shape[1]
    l = pl.program_id(1)
    base = l * lt                                   # x position of the first main-tile lane

    # ---- assemble the window x[base-H : base+lt+H] in the VMEM scratch ----------------------
    xw_ref[:, H:H + lt] = x_ref[0]                  # main tile
    xw_ref[:, 0:H] = xl_ref[0]                      # left halo

    @pl.when(l == 0)                                # tile 0: left halo == conv's left zero pad
    def _():
        xw_ref[:, 0:H] = jnp.zeros((c_in, H), x_ref.dtype)

    # right halo: lanes at positions >= `length` are the conv's right zero pad (this also
    # neutralizes the clamped / partial DMA of the final tiles)
    jr = lax.broadcasted_iota(jnp.int32, (c_in, H), 1)
    xw_ref[:, H + lt:H + lt + H] = jnp.where(base + lt + jr < length, xr_ref[0], 0.0)

    @pl.when(base + lt > length)                    # final tile: main block may run past `length`
    def _():
        jm = lax.broadcasted_iota(jnp.int32, (c_in, lt), 1)
        xw_ref[:, H:H + lt] = jnp.where(base + jm < length, x_ref[0], 0.0)

    # ---- K shifted pointwise matmuls on the MXU, accumulated in f32 -------------------------
    acc = None
    for k in range(kernel_size):                    # K is tiny & static -> unrolled
        off = H + k * dilation - pad                # static lane offset into the window
        tap = jnp.dot(w_ref[k], xw_ref[:, off:off + lt],
                      preferred_element_type=jnp.float32)
        acc = tap if acc is None else acc + tap
    o_ref[0] = (acc + b_ref[...]).astype(o_ref.dtype)


def conv1d_weightnorm(x, weight_v, weight_g, bias, *, dilation=1, block_l=16384):
    """Forward pass of Conv: weight-normalized 'same'-padded dilated Conv1d.

    x        : (B, C_in, L)      float32, NCL layout (matches PyTorch)
    weight_v : (C_out, C_in, K)  weight_norm direction parameter `v`
    weight_g : (C_out, 1, 1)     weight_norm magnitude parameter `g`
    bias     : (C_out,)
    returns  : (B, C_out, L_out) with L_out = L + 2*pad - dilation*(K-1)
    """
    B, C_in, L = x.shape
    C_out, _, K = weight_v.shape
    pad = dilation * (K - 1) // 2
    halo = dilation * (K - 1)
    L_out = L + 2 * pad - halo
    assert L_out >= 1, "input too short for this kernel_size/dilation"

    # weight_norm: w = g * v / ||v|| (norm over (C_in, K) per output channel) -- done once.
    v32 = weight_v.astype(jnp.float32)
    norm = jnp.sqrt(jnp.sum(v32 * v32, axis=(1, 2), keepdims=True))
    w_eff = weight_g.astype(jnp.float32) * v32 / norm             # (C_out, C_in, K)
    w_kio = jnp.transpose(w_eff, (2, 0, 1)).astype(x.dtype)       # (K, C_out, C_in)
    bias2d = bias.reshape(C_out, 1).astype(x.dtype)

    # Halo block width: multiple of 128 lanes covering dilation*(K-1).
    H = 128 * max(1, _cdiv(halo, 128))

    # Tiny inputs only: right-pad so one full lane block exists.  For real lengths x is
    # consumed in place -- no whole-array jnp.pad round trip through HBM.
    x_in, L_in, L_out_t, trim = x, L, L_out, False
    if L_out < H:
        L_in = H + halo - 2 * pad
        x_in = jnp.pad(x, ((0, 0), (0, 0), (0, L_in - L)))
        L_out_t, trim = H, True

    # Balanced, lane-dense L tile: multiple of H, <= L_out_t, ~block_l lanes per grid step so
    # the ~0.35us/step pipeline overhead is amortized while last-tile overshoot stays small.
    n_t0 = max(1, _cdiv(L_out_t, block_l))
    lt = _round_up(_cdiv(L_out_t, n_t0), H)
    lt = max(H, min(lt, (L_out_t // H) * H))
    n_t = _cdiv(L_out_t, lt)
    q = lt // H                                   # halo blocks per main tile
    max_hb = (L_in - 1) // H                      # last halo-block index with any valid data

    kernel = functools.partial(_conv1d_kernel, kernel_size=K, dilation=dilation,
                               pad=pad, halo_lanes=H, length=L_in)

    out = pl.pallas_call(
        kernel,
        out_shape=jax.ShapeDtypeStruct((B, C_out, L_out_t), x.dtype),
        grid_spec=pltpu.PrefetchScalarGridSpec(
            num_scalar_prefetch=0,
            grid=(B, n_t),
            in_specs=[
                # main tile, left halo and right halo are three windows of the same array
                pl.BlockSpec((1, C_in, lt), lambda b, l: (b, 0, l)),
                pl.BlockSpec((1, C_in, H),
                             lambda b, l: (b, 0, jnp.maximum(l * q - 1, 0))),
                pl.BlockSpec((1, C_in, H),
                             lambda b, l: (b, 0, jnp.minimum((l + 1) * q, max_hb))),
                # weights & bias: constant block index -> stay resident in VMEM
                pl.BlockSpec((K, C_out, C_in), lambda b, l: (0, 0, 0)),
                pl.BlockSpec((C_out, 1), lambda b, l: (0, 0)),
            ],
            out_specs=pl.BlockSpec((1, C_out, lt), lambda b, l: (b, 0, l)),
            scratch_shapes=[pltpu.VMEM((C_in, lt + 2 * H), x.dtype)],
        ),
        compiler_params=pltpu.CompilerParams(
            dimension_semantics=("parallel", "parallel"),
        ),
    )(x_in, x_in, x_in, w_kio, bias2d)

    return out[:, :, :L_out] if trim else out


if __name__ == "__main__":
    # Small shapes consistent with the module: batch=2, in=4, out=8, K=3, dilation=1, length=16.
    B, C_in, C_out, K, dilation, L = 2, 4, 8, 3, 1, 16

    key = jax.random.PRNGKey(0)
    kx, kv, kg, kb = jax.random.split(key, 4)
    x = jax.random.normal(kx, (B, C_in, L), dtype=jnp.float32)
    # Deterministic parameters: kaiming-normal-style direction `v`, positive magnitude `g`.
    weight_v = jax.random.normal(kv, (C_out, C_in, K), dtype=jnp.float32) * math.sqrt(2.0 / (C_in * K))
    weight_g = jnp.abs(jax.random.normal(kg, (C_out, 1, 1), dtype=jnp.float32)) + 0.5
    bias = 0.1 * jax.random.normal(kb, (C_out,), dtype=jnp.float32)

    # Pure-JAX reference: weight_norm + dilated 'same' Conv1d.
    norm = jnp.sqrt(jnp.sum(weight_v ** 2, axis=(1, 2), keepdims=True))
    w_eff = weight_g * weight_v / norm

    def ref_conv(xx, dil):
        p = dil * (K - 1) // 2
        return jax.lax.conv_general_dilated(
            xx, w_eff, window_strides=(1,), padding=[(p, p)],
            rhs_dilation=(dil,), dimension_numbers=("NCH", "OIH", "NCH"),
            precision=jax.lax.Precision.HIGHEST) + bias[None, :, None]

    # 1) Tiny input: exercises the cheap pad-and-trim path.
    out1 = jax.block_until_ready(conv1d_weightnorm(x, weight_v, weight_g, bias, dilation=dilation))
    ref1 = ref_conv(x, dilation)
    assert out1.shape == ref1.shape == (B, C_out, L)
    assert jnp.allclose(out1, ref1, atol=1e-4, rtol=1e-4), float(jnp.max(jnp.abs(out1 - ref1)))

    # 2) Multi-tile fast path (no jnp.pad), dilation=2, L not a multiple of 128, clamped tail halo.
    L2, d2 = 300, 2
    x2 = jax.random.normal(jax.random.PRNGKey(1), (1, C_in, L2), dtype=jnp.float32)
    out2 = jax.block_until_ready(conv1d_weightnorm(x2, weight_v, weight_g, bias, dilation=d2))
    ref2 = ref_conv(x2, d2)
    assert out2.shape == ref2.shape == (1, C_out, L2)
    assert jnp.allclose(out2, ref2, atol=1e-4, rtol=1e-4), float(jnp.max(jnp.abs(out2 - ref2)))

    # 3) Several balanced tiles with a partial final tile (block_l forced small to exercise tiling).
    L3 = 3000
    x3 = jax.random.normal(jax.random.PRNGKey(2), (2, C_in, L3), dtype=jnp.float32)
    out3 = jax.block_until_ready(
        conv1d_weightnorm(x3, weight_v, weight_g, bias, dilation=1, block_l=1024))
    ref3 = ref_conv(x3, 1)
    assert out3.shape == ref3.shape == (2, C_out, L3)
    assert jnp.allclose(out3, ref3, atol=1e-4, rtol=1e-4), float(jnp.max(jnp.abs(out3 - ref3)))

    print("KERNEL_OK")
</pallas_src>

<mosaic_0001>
module attributes {stable_mosaic.version = 11 : i64} {
  func.func @_conv1d_kernel(%arg0: i32, %arg1: i32, %arg2: memref<1x4x128xf32, #tpu.memory_space<vmem>>, %arg3: memref<1x4x128xf32, #tpu.memory_space<vmem>>, %arg4: memref<1x4x128xf32, #tpu.memory_space<vmem>>, %arg5: memref<3x8x4xf32, #tpu.memory_space<vmem>>, %arg6: memref<8x1xf32, #tpu.memory_space<vmem>>, %arg7: memref<1x8x128xf32, #tpu.memory_space<vmem>>, %arg8: memref<4x384xf32, #tpu.memory_space<vmem>>) attributes {dimension_semantics = [#tpu.dimension_semantics<parallel>, #tpu.dimension_semantics<parallel>], iteration_bounds = array<i64: 2, 1>, scalar_prefetch = 0 : i64, scratch_operands = 1 : i64, tpu.core_type = #tpu.core_type<tc>, window_params = [{transform_indices = @transform_0, window_bounds = array<i64: 1, 4, 128>}, {transform_indices = @transform_1, window_bounds = array<i64: 1, 4, 128>}, {transform_indices = @transform_2, window_bounds = array<i64: 1, 4, 128>}, {pipeline_mode = #tpu.pipeline_mode<synchronous>, transform_indices = @transform_3, window_bounds = array<i64: 3, 8, 4>}, {pipeline_mode = #tpu.pipeline_mode<synchronous>, transform_indices = @transform_4, window_bounds = array<i64: 8, 1>}, {transform_indices = @transform_5, window_bounds = array<i64: 1, 8, 128>}]} {
    %c128_i32 = arith.constant 128 : i32
    %0 = arith.muli %arg1, %c128_i32 : i32
    %c0 = arith.constant 0 : index
    %c0_0 = arith.constant 0 : index
    %c0_1 = arith.constant 0 : index
    %1 = vector.load %arg2[%c0, %c0_0, %c0_1] : memref<1x4x128xf32, #tpu.memory_space<vmem>>, vector<1x4x128xf32>
    %2 = vector.shape_cast %1 : vector<1x4x128xf32> to vector<4x128xf32>
    %c0_2 = arith.constant 0 : index
    %c128 = arith.constant 128 : index
    %3 = vector.load %arg8[%c0_2, %c128] : memref<4x384xf32, #tpu.memory_space<vmem>>, vector<4x128xf32>
    tpu.vector_store %arg8[%c0_2, %c128], %2 {strides = array<i32>} : memref<4x384xf32, #tpu.memory_space<vmem>>, vector<4x128xf32>,
    %c0_3 = arith.constant 0 : index
    %c0_4 = arith.constant 0 : index
    %c0_5 = arith.constant 0 : index
    %4 = vector.load %arg3[%c0_3, %c0_4, %c0_5] : memref<1x4x128xf32, #tpu.memory_space<vmem>>, vector<1x4x128xf32>
    %5 = vector.shape_cast %4 : vector<1x4x128xf32> to vector<4x128xf32>
    %c0_6 = arith.constant 0 : index
    %c0_7 = arith.constant 0 : index
    %6 = vector.load %arg8[%c0_6, %c0_7] : memref<4x384xf32, #tpu.memory_space<vmem>>, vector<4x128xf32>
    tpu.vector_store %arg8[%c0_6, %c0_7], %5 {strides = array<i32>} : memref<4x384xf32, #tpu.memory_space<vmem>>, vector<4x128xf32>,
    %c0_i32 = arith.constant 0 : i32
    %7 = arith.cmpi eq, %arg1, %c0_i32 : i32
    %8 = arith.extui %7 : i1 to i32
    %c0_i32_8 = arith.constant 0 : i32
    %9 = arith.cmpi ne, %8, %c0_i32_8 : i32
    scf.if %9 {
      %cst_37 = arith.constant 0.000000e+00 : f32
      %45 = vector.broadcast %cst_37 : f32 to vector<4x128xf32>
      %c0_38 = arith.constant 0 : index
      %c0_39 = arith.constant 0 : index
      %46 = vector.load %arg8[%c0_38, %c0_39] : memref<4x384xf32, #tpu.memory_space<vmem>>, vector<4x128xf32>
      tpu.vector_store %arg8[%c0_38, %c0_39], %45 {strides = array<i32>} : memref<4x384xf32, #tpu.memory_space<vmem>>, vector<4x128xf32>,
    } else {
    }
    %10 = tpu.iota {dimensions = array<i32: 1>} : vector<4x128xi32>
    %c128_i32_9 = arith.constant 128 : i32
    %11 = arith.addi %0, %c128_i32_9 : i32
    %12 = vector.broadcast %11 : i32 to vector<4x128xi32>
    %13 = arith.addi %12, %10 : vector<4x128xi32>
    %c128_i32_10 = arith.constant 128 : i32
    %14 = vector.broadcast %c128_i32_10 : i32 to vector<4x128xi32>
    %15 = arith.cmpi slt, %13, %14 : vector<4x128xi32>
    %c0_11 = arith.constant 0 : index
    %c0_12 = arith.constant 0 : index
    %c0_13 = arith.constant 0 : index
    %16 = vector.load %arg4[%c0_11, %c0_12, %c0_13] : memref<1x4x128xf32, #tpu.memory_space<vmem>>, vector<1x4x128xf32>
    %17 = vector.shape_cast %16 : vector<1x4x128xf32> to vector<4x128xf32>
    %cst = arith.constant 0.000000e+00 : f32
    %18 = vector.broadcast %cst : f32 to vector<4x128xf32>
    %19 = arith.select %15, %17, %18 : vector<4x128xi1>, vector<4x128xf32>
    %c0_14 = arith.constant 0 : index
    %c256 = arith.constant 256 : index
    %20 = vector.load %arg8[%c0_14, %c256] : memref<4x384xf32, #tpu.memory_space<vmem>>, vector<4x128xf32>
    tpu.vector_store %arg8[%c0_14, %c256], %19 {strides = array<i32>} : memref<4x384xf32, #tpu.memory_space<vmem>>, vector<4x128xf32>,
    %c128_i32_15 = arith.constant 128 : i32
    %21 = arith.addi %0, %c128_i32_15 : i32
    %c128_i32_16 = arith.constant 128 : i32
    %22 = arith.cmpi sgt, %21, %c128_i32_16 : i32
    %23 = arith.extui %22 : i1 to i32
    %c0_i32_17 = arith.constant 0 : i32
    %24 = arith.cmpi ne, %23, %c0_i32_17 : i32
    scf.if %24 {
      %45 = tpu.iota {dimensions = array<i32: 1>} : vector<4x128xi32>
      %46 = vector.broadcast %0 : i32 to vector<4x128xi32>
      %47 = arith.addi %46, %45 : vector<4x128xi32>
      %c128_i32_37 = arith.constant 128 : i32
      %48 = vector.broadcast %c128_i32_37 : i32 to vector<4x128xi32>
      %49 = arith.cmpi slt, %47, %48 : vector<4x128xi32>
      %c0_38 = arith.constant 0 : index
      %c0_39 = arith.constant 0 : index
      %c0_40 = arith.constant 0 : index
      %50 = vector.load %arg2[%c0_38, %c0_39, %c0_40] : memref<1x4x128xf32, #tpu.memory_space<vmem>>, vector<1x4x128xf32>
      %51 = vector.shape_cast %50 : vector<1x4x128xf32> to vector<4x128xf32>
      %cst_41 = arith.constant 0.000000e+00 : f32
      %52 = vector.broadcast %cst_41 : f32 to vector<4x128xf32>
      %53 = arith.select %49, %51, %52 : vector<4x128xi1>, vector<4x128xf32>
      %c0_42 = arith.constant 0 : index
      %c128_43 = arith.constant 128 : index
      %54 = vector.load %arg8[%c0_42, %c128_43] : memref<4x384xf32, #tpu.memory_space<vmem>>, vector<4x128xf32>
      tpu.vector_store %arg8[%c0_42, %c128_43], %53 {strides = array<i32>} : memref<4x384xf32, #tpu.memory_space<vmem>>, vector<4x128xf32>,
    } else {
    }
    %c0_18 = arith.constant 0 : index
    %c0_19 = arith.constant 0 : index
    %c0_20 = arith.constant 0 : index
    %25 = vector.load %arg5[%c0_18, %c0_19, %c0_20] : memref<3x8x4xf32, #tpu.memory_space<vmem>>, vector<1x8x4xf32>
    %26 = vector.shape_cast %25 : vector<1x8x4xf32> to vector<8x4xf32>
    %c0_21 = arith.constant 0 : index
    %c127 = arith.constant 127 : index
    %27 = vector.load %arg8[%c0_21, %c127] : memref<4x384xf32, #tpu.memory_space<vmem>>, vector<4x128xf32>
    %cst_22 = arith.constant dense<0.000000e+00> : vector<8x128xf32>
    %28 = tpu.matmul %26, %27, %cst_22 {dimension_numbers = #tpu.dot_dimension_numbers<[1], [0], [0], [1], [0, 0, 1, 1], [], []>} : vector<8x4xf32>, vector<4x128xf32>, vector<8x128xf32> -> vector<8x128xf32>
    %c1 = arith.constant 1 : index
    %c0_23 = arith.constant 0 : index
    %c0_24 = arith.constant 0 : index
    %29 = vector.load %arg5[%c1, %c0_23, %c0_24] : memref<3x8x4xf32, #tpu.memory_space<vmem>>, vector<1x8x4xf32>
    %30 = vector.shape_cast %29 : vector<1x8x4xf32> to vector<8x4xf32>
    %c0_25 = arith.constant 0 : index
    %c128_26 = arith.constant 128 : index
    %31 = vector.load %arg8[%c0_25, %c128_26] : memref<4x384xf32, #tpu.memory_space<vmem>>, vector<4x128xf32>
    %cst_27 = arith.constant dense<0.000000e+00> : vector<8x128xf32>
    %32 = tpu.matmul %30, %31, %cst_27 {dimension_numbers = #tpu.dot_dimension_numbers<[1], [0], [0], [1], [0, 0, 1, 1], [], []>} : vector<8x4xf32>, vector<4x128xf32>, vector<8x128xf32> -> vector<8x128xf32>
    %33 = arith.addf %28, %32 : vector<8x128xf32>
    %c2 = arith.constant 2 : index
    %c0_28 = arith.constant 0 : index
    %c0_29 = arith.constant 0 : index
    %34 = vector.load %arg5[%c2, %c0_28, %c0_29] : memref<3x8x4xf32, #tpu.memory_space<vmem>>, vector<1x8x4xf32>
    %35 = vector.shape_cast %34 : vector<1x8x4xf32> to vector<8x4xf32>
    %c0_30 = arith.constant 0 : index
    %c129 = arith.constant 129 : index
    %36 = vector.load %arg8[%c0_30, %c129] : memref<4x384xf32, #tpu.memory_space<vmem>>, vector<4x128xf32>
    %cst_31 = arith.constant dense<0.000000e+00> : vector<8x128xf32>
    %37 = tpu.matmul %35, %36, %cst_31 {dimension_numbers = #tpu.dot_dimension_numbers<[1], [0], [0], [1], [0, 0, 1, 1], [], []>} : vector<8x4xf32>, vector<4x128xf32>, vector<8x128xf32> -> vector<8x128xf32>
    %38 = arith.addf %33, %37 : vector<8x128xf32>
    %c0_32 = arith.constant 0 : index
    %c0_33 = arith.constant 0 : index
    %39 = vector.load %arg6[%c0_32, %c0_33] : memref<8x1xf32, #tpu.memory_space<vmem>>, vector<8x1xf32>
    %40 = vector.broadcast %39 : vector<8x1xf32> to vector<8x128xf32>
    %41 = arith.addf %38, %40 : vector<8x128xf32>
    %c0_34 = arith.constant 0 : index
    %c0_35 = arith.constant 0 : index
    %c0_36 = arith.constant 0 : index
    %42 = vector.load %arg7[%c0_34, %c0_35, %c0_36] : memref<1x8x128xf32, #tpu.memory_space<vmem>>, vector<1x8x128xf32>
    %43 = vector.shape_cast %42 : vector<1x8x128xf32> to vector<8x128xf32>
    %44 = vector.shape_cast %41 : vector<8x128xf32> to vector<1x8x128xf32>
    tpu.vector_store %arg7[%c0_34, %c0_35, %c0_36], %44 {strides = array<i32>} : memref<1x8x128xf32, #tpu.memory_space<vmem>>, vector<1x8x128xf32>,
    return
  }
  func.func @transform_0(%arg0: i32, %arg1: i32) -> (i32, i32, i32) {
    %c0_i32 = arith.constant 0 : i32
    %c0_i32_0 = arith.constant 0 : i32
    return %arg0, %c0_i32, %arg1 : i32, i32, i32
  }
  func.func @transform_1(%arg0: i32, %arg1: i32) -> (i32, i32, i32) {
    %c1_i32 = arith.constant 1 : i32
    %0 = arith.muli %arg1, %c1_i32 : i32
    %c1_i32_0 = arith.constant 1 : i32
    %1 = arith.subi %0, %c1_i32_0 : i32
    %c0_i32 = arith.constant 0 : i32
    %2 = arith.maxsi %1, %c0_i32 : i32
    %c0_i32_1 = arith.constant 0 : i32
    %c0_i32_2 = arith.constant 0 : i32
    return %arg0, %c0_i32_1, %2 : i32, i32, i32
  }
  func.func @transform_2(%arg0: i32, %arg1: i32) -> (i32, i32, i32) {
    %c1_i32 = arith.constant 1 : i32
    %0 = arith.addi %arg1, %c1_i32 : i32
    %c1_i32_0 = arith.constant 1 : i32
    %1 = arith.muli %0, %c1_i32_0 : i32
    %c0_i32 = arith.constant 0 : i32
    %2 = arith.minsi %1, %c0_i32 : i32
    %c0_i32_1 = arith.constant 0 : i32
    %c0_i32_2 = arith.constant 0 : i32
    return %arg0, %c0_i32_1, %2 : i32, i32, i32
  }
  func.func @transform_3(%arg0: i32, %arg1: i32) -> (i32, i32, i32) {
    %c0_i32 = arith.constant 0 : i32
    %c0_i32_0 = arith.constant 0 : i32
    %c0_i32_1 = arith.constant 0 : i32
    %c0_i32_2 = arith.constant 0 : i32
    return %c0_i32, %c0_i32_0, %c0_i32_1 : i32, i32, i32
  }
  func.func @transform_4(%arg0: i32, %arg1: i32) -> (i32, i32) {
    %c0_i32 = arith.constant 0 : i32
    %c0_i32_0 = arith.constant 0 : i32
    %c0_i32_1 = arith.constant 0 : i32
    return %c0_i32, %c0_i32_0 : i32, i32
  }
  func.func @transform_5(%arg0: i32, %arg1: i32) -> (i32, i32, i32) {
    %c0_i32 = arith.constant 0 : i32
    %c0_i32_0 = arith.constant 0 : i32
    return %arg0, %c0_i32, %arg1 : i32, i32, i32
  }
}

</mosaic_0001>

<llo_original>
// kernel: tpu_custom_call.1
$region0: #{tpu_custom_call.1}
  #allocation0 [shape = 'u32[]', space=smem, size = 0x4, offset = 0x4, fixed_abs, tag = 'smem constant byte address 0x4 - core index']
  #allocation1 [shape = 'u32[144,128]{1,0:T(1,128)}', space=vmem, size = 0x12000, scoped, tag = 'internal scratch']
  #allocation2 [shape = 'f32[4,384]{1,0:T(4,128)}', space=vmem, size = 0x1800, scoped, tag = 'scratch operand']
  %s0 = inlined_call_operand.vmem [shape: f32[2,4,128], index: 0, kind: input, shape index: {}]
  %s1 = inlined_call_operand.vmem [shape: f32[2,4,128], index: 1, kind: input, shape index: {}]
  %s2 = inlined_call_operand.vmem [shape: f32[2,4,128], index: 2, kind: input, shape index: {}]
  %s3 = inlined_call_operand.vmem [shape: f32[3,8,4], index: 3, kind: input, shape index: {}]
  %s4 = inlined_call_operand.vmem [shape: f32[8,1], index: 4, kind: input, shape index: {}]
  %s5 = inlined_call_operand.hbm [shape: f32[2,8,128], index: 5, kind: output, shape index: {}]
  %s6 = sld [smem:[#allocation0]]
  $region61: #{tpu_custom_call.1} parent=0
    _
  %s8 = ssub.s32 1, %s6
  %s9 = scalar_select 0, %s8, %s6
  $region1: #{tpu_custom_call.1} parent=0
    #allocation3 [shape = 'u8[8192]{0}', space=vmem, size = 0x2000, scoped, tag = 'output window, operand 0']
    #allocation4 [shape = 's32[2]{0}', space=sflag, size = 0x8, scoped, tag = 'scoped memory for tpu_custom_call.1']
    %10 = vsyncpa [#allocation4], 0
    %s11 = scalar_lea.sflag [#allocation4], 1
    %12 = vsyncpa %s11, 0
    loop: start=0, step=1, limit=4
    $region2: #{tpu_custom_call.1} parent=1 // loop_pre_header
      _
    $region3: #{tpu_custom_call.1} parent=1 // loop_header
      %s14 = sphi 0, %s18
      %p15 = scmp.ge.s32.totalorder %s14, 4
      %s21 = sphi 0, %s33
      %s22 = sphi 0, %s29
      %s23 = sphi 0, %s21
      %s24 = sphi 0, %s22
      %s25 = sphi 0, %s23
      %s26 = sphi 0, %s24
      %s38 = sphi 0, %s40
      %s41 = sphi 0, %s38
      %s42 = sphi 0, %s41
      %s58 = sphi 0, %s42
      %s72 = sphi 0, %s74
      %s75 = sphi 0, %s72
      %s76 = sphi 0, %s75
      %s92 = sphi 0, %s76
      %s106 = sphi 0, %s108
      %s109 = sphi 0, %s106
      %s110 = sphi 0, %s109
      %s126 = sphi 0, %s110
      %s130 = sphi 0, %s130
      %s132 = sphi 0, %s130
      %s133 = sphi 0, %s132
      %s147 = sphi 0, %s133
      %s151 = sphi 0, %s151
      %s153 = sphi 0, %s151
      %s154 = sphi 0, %s153
      %s168 = sphi 0, %s154
      %s176 = sphi 0, %s178
      %s179 = sphi 0, %s176
      %s180 = sphi 0, %s179
      %s196 = sphi 0, %s180
    $region4: #{tpu_custom_call.1} parent=1 // loop_header_branch
      %17 = sbr.rel (%p15) target = $region8
    $region5: #{tpu_custom_call.1} parent=1 // loop_body
      %s19 = ssub.s32 %s14, 1
      %s20 = ssub.s32 %s14, 2
      %s27 = sadd.s32 1, %s22
      %p28 = scmp.ge.s32.totalorder %s27, 1
      %s29 = scalar_select %p28, 0, %s27
      %s30 = sadd.s32 1, %s21
      %s31 = scalar_select %p28, %s30, %s21
      %p32 = scmp.ge.s32.totalorder %s31, 2
      %s33 = scalar_select %p32, 0, %s31
      %s34 = ssub.s32 %s21, %s33
      %s35 = ssub.s32 %s22, %s29
      %s36 = sor.u32 %s34, %s35
      %p37 = scmp.eq.s32.totalorder %s36, 0
      %s39 = sadd.s32 %s38, 1
      %s40 = scalar_select %p37, %s38, %s39
      %p43 = pneg %p37
      %p44 = scmp.eq.s32.totalorder %s14, 1
      %p45 = por %p43, %p44
      %p46 = scmp.ne.s32.totalorder %s38, %s41
      %p47 = scmp.eq.s32.totalorder %s14, 0
      %p48 = por %p46, %p47
      %p49 = scmp.ne.s32.totalorder %s38, %s41
      %p50 = scmp.eq.s32.totalorder %s19, 1
      %p51 = por %p49, %p50
      %p52 = scmp.ne.s32.totalorder %s41, %s42
      %p53 = scmp.eq.s32.totalorder %s19, 0
      %p54 = por %p52, %p53
      %p55 = scmp.ne.s32.totalorder %s41, %s42
      %p56 = scmp.eq.s32.totalorder %s20, 1
      %p57 = por %p55, %p56
      %p59 = scmp.ne.s32.totalorder %s42, %s58
      %p60 = scmp.eq.s32.totalorder %s20, 0
      %p61 = por %p59, %p60
      %s62 = ssub.s32 %s22, 1
      %p63 = scmp.gt.s32.totalorder %s62, 0
      %s64 = scalar_select %p63, %s62, 0
      %s65 = ssub.s32 %s29, 1
      %p66 = scmp.gt.s32.totalorder %s65, 0
      %s67 = scalar_select %p66, %s65, 0
      %s68 = ssub.s32 %s21, %s33
      %s69 = ssub.s32 %s64, %s67
      %s70 = sor.u32 %s68, %s69
      %p71 = scmp.eq.s32.totalorder %s70, 0
      %s73 = sadd.s32 %s72, 1
      %s74 = scalar_select %p71, %s72, %s73
      %p77 = pneg %p71
      %p78 = scmp.eq.s32.totalorder %s14, 1
      %p79 = por %p77, %p78
      %p80 = scmp.ne.s32.totalorder %s72, %s75
      %p81 = scmp.eq.s32.totalorder %s14, 0
      %p82 = por %p80, %p81
      %p83 = scmp.ne.s32.totalorder %s72, %s75
      %p84 = scmp.eq.s32.totalorder %s19, 1
      %p85 = por %p83, %p84
      %p86 = scmp.ne.s32.totalorder %s75, %s76
      %p87 = scmp.eq.s32.totalorder %s19, 0
      %p88 = por %p86, %p87
      %p89 = scmp.ne.s32.totalorder %s75, %s76
      %p90 = scmp.eq.s32.totalorder %s20, 1
      %p91 = por %p89, %p90
      %p93 = scmp.ne.s32.totalorder %s76, %s92
      %p94 = scmp.eq.s32.totalorder %s20, 0
      %p95 = por %p93, %p94
      %s96 = sadd.s32 %s22, 1
      %p97 = scmp.lt.s32.totalorder %s96, 0
      %s98 = scalar_select %p97, %s96, 0
      %s99 = sadd.s32 %s29, 1
      %p100 = scmp.lt.s32.totalorder %s99, 0
      %s101 = scalar_select %p100, %s99, 0
      %s102 = ssub.s32 %s21, %s33
      %s103 = ssub.s32 %s98, %s101
      %s104 = sor.u32 %s102, %s103
      %p105 = scmp.eq.s32.totalorder %s104, 0
      %s107 = sadd.s32 %s106, 1
      %s108 = scalar_select %p105, %s106, %s107
      %p111 = pneg %p105
      %p112 = scmp.eq.s32.totalorder %s14, 1
      %p113 = por %p111, %p112
      %p114 = scmp.ne.s32.totalorder %s106, %s109
      %p115 = scmp.eq.s32.totalorder %s14, 0
      %p116 = por %p114, %p115
      %p117 = scmp.ne.s32.totalorder %s106, %s109
      %p118 = scmp.eq.s32.totalorder %s19, 1
      %p119 = por %p117, %p118
      %p120 = scmp.ne.s32.totalorder %s109, %s110
      %p121 = scmp.eq.s32.totalorder %s19, 0
      %p122 = por %p120, %p121
      %p123 = scmp.ne.s32.totalorder %s109, %s110
      %p124 = scmp.eq.s32.totalorder %s20, 1
      %p125 = por %p123, %p124
      %p127 = scmp.ne.s32.totalorder %s110, %s126
      %p128 = scmp.eq.s32.totalorder %s20, 0
      %p129 = por %p127, %p128
      %s131 = sadd.s32 %s130, 1
      %p134 = scmp.eq.s32.totalorder %s14, 1
      %p135 = scmp.ne.s32.totalorder %s130, %s132
      %p136 = scmp.eq.s32.totalorder %s14, 0
      %p137 = por %p135, %p136
      %p138 = scmp.ne.s32.totalorder %s130, %s132
      %p139 = scmp.eq.s32.totalorder %s19, 1
      %p140 = por %p138, %p139
      %p141 = scmp.ne.s32.totalorder %s132, %s133
      %p142 = scmp.eq.s32.totalorder %s19, 0
      %p143 = por %p141, %p142
      %p144 = scmp.ne.s32.totalorder %s132, %s133
      %p145 = scmp.eq.s32.totalorder %s20, 1
      %p146 = por %p144, %p145
      %p148 = scmp.ne.s32.totalorder %s133, %s147
      %p149 = scmp.eq.s32.totalorder %s20, 0
      %p150 = por %p148, %p149
      %s152 = sadd.s32 %s151, 1
      %p155 = scmp.eq.s32.totalorder %s14, 1
      %p156 = scmp.ne.s32.totalorder %s151, %s153
      %p157 = scmp.eq.s32.totalorder %s14, 0
      %p158 = por %p156, %p157
      %p159 = scmp.ne.s32.totalorder %s151, %s153
      %p160 = scmp.eq.s32.totalorder %s19, 1
      %p161 = por %p159, %p160
      %p162 = scmp.ne.s32.totalorder %s153, %s154
      %p163 = scmp.eq.s32.totalorder %s19, 0
      %p164 = por %p162, %p163
      %p165 = scmp.ne.s32.totalorder %s153, %s154
      %p166 = scmp.eq.s32.totalorder %s20, 1
      %p167 = por %p165, %p166
      %p169 = scmp.ne.s32.totalorder %s154, %s168
      %p170 = scmp.eq.s32.totalorder %s20, 0
      %p171 = por %p169, %p170
      %s172 = ssub.s32 %s21, %s33
      %s173 = ssub.s32 %s22, %s29
      %s174 = sor.u32 %s172, %s173
      %p175 = scmp.eq.s32.totalorder %s174, 0
      %s177 = sadd.s32 %s176, 1
      %s178 = scalar_select %p175, %s176, %s177
      %p181 = pneg %p175
      %p182 = scmp.eq.s32.totalorder %s14, 1
      %p183 = por %p181, %p182
      %p184 = scmp.ne.s32.totalorder %s176, %s179
      %p185 = scmp.eq.s32.totalorder %s14, 0
      %p186 = por %p184, %p185
      %p187 = scmp.ne.s32.totalorder %s176, %s179
      %p188 = scmp.eq.s32.totalorder %s19, 1
      %p189 = por %p187, %p188
      %p190 = scmp.ne.s32.totalorder %s179, %s180
      %p191 = scmp.eq.s32.totalorder %s19, 0
      %p192 = por %p190, %p191
      %p193 = scmp.ne.s32.totalorder %s179, %s180
      %p194 = scmp.eq.s32.totalorder %s20, 1
      %p195 = por %p193, %p194
      %p197 = scmp.ne.s32.totalorder %s180, %s196
      %p198 = scmp.eq.s32.totalorder %s20, 0
      %p199 = por %p197, %p198
      %p200 = scmp.le.s32.totalorder 1, %s14
      %p201 = scmp.lt.s32.totalorder %s14, 3
      %p202 = pnand %p200, %p201
      %p203 = pneg %p202
      // Predicated region
      $region9: #{tpu_custom_call.1} parent=5 // pred_check
        _
      $region10: #{tpu_custom_call.1} parent=5 // pred_check_branch
        %205 = sbr.rel (%p202) target = $region12
      $region11: #{tpu_custom_call.1} parent=5 // pred_region
        %s206 = ssub.s32 %s14, 1
        // Predicated region
        $region13: #{tpu_custom_call.1} parent=11 // pred_check
          %p207 = pneg %p143
        $region14: #{tpu_custom_call.1} parent=11 // pred_check_branch
          %209 = sbr.rel (%p207) target = $region16
        $region15: #{tpu_custom_call.1} parent=11 // pred_region
          _
        $region16: #{tpu_custom_call.1} parent=11 // pred_fallthru
          _
        // Predicated region
        $region17: #{tpu_custom_call.1} parent=11 // pred_check
          %p210 = pneg %p164
        $region18: #{tpu_custom_call.1} parent=11 // pred_check_branch
          %212 = sbr.rel (%p210) target = $region20
        $region19: #{tpu_custom_call.1} parent=11 // pred_region
          _
        $region20: #{tpu_custom_call.1} parent=11 // pred_fallthru
          _
      $region12: #{tpu_custom_call.1} parent=5 // pred_fallthru
        _
      %p213 = scmp.lt.s32.totalorder %s14, 2
      // Predicated region
      $region21: #{tpu_custom_call.1} parent=5 // pred_check
        %p214 = pneg %p213
      $region22: #{tpu_custom_call.1} parent=5 // pred_check_branch
        %216 = sbr.rel (%p214) target = $region24
      $region23: #{tpu_custom_call.1} parent=5 // pred_region
        // Predicated region
        $region25: #{tpu_custom_call.1} parent=23 // pred_check
          %p217 = pneg %p48
        $region26: #{tpu_custom_call.1} parent=23 // pred_check_branch
          %219 = sbr.rel (%p217) target = $region28
        $region27: #{tpu_custom_call.1} parent=23 // pred_region
          %p220 = scmp.lt.s32.totalorder %s21, 1
          %s221 = scalar_select %p220, %s21, 1
          %p222 = scmp.lt.s32.totalorder %s22, 0
          %s223 = scalar_select %p222, %s22, 0
          %s224 = sadd.s32 %s223, %s221
          %s225 = smul.addr %s224, 4
          %s226 = scalar_lea.vmem %s0, %s225
        $region28: #{tpu_custom_call.1} parent=23 // pred_fallthru
          _
        // Predicated region
        $region29: #{tpu_custom_call.1} parent=23 // pred_check
          %p227 = pneg %p82
        $region30: #{tpu_custom_call.1} parent=23 // pred_check_branch
          %229 = sbr.rel (%p227) target = $region32
        $region31: #{tpu_custom_call.1} parent=23 // pred_region
          %s230 = ssub.s32 %s22, 1
          %p231 = scmp.gt.s32.totalorder %s230, 0
          %s232 = scalar_select %p231, %s230, 0
          %p233 = scmp.lt.s32.totalorder %s21, 1
          %s234 = scalar_select %p233, %s21, 1
          %p235 = scmp.lt.s32.totalorder %s232, 0
          %s236 = scalar_select %p235, %s232, 0
          %s237 = sadd.s32 %s236, %s234
          %s238 = smul.addr %s237, 4
          %s239 = scalar_lea.vmem %s1, %s238
          %s240 = ssub.s32 %s22, 1
          %p241 = scmp.gt.s32.totalorder %s240, 0
          %s242 = scalar_select %p241, %s240, 0
        $region32: #{tpu_custom_call.1} parent=23 // pred_fallthru
          _
        // Predicated region
        $region33: #{tpu_custom_call.1} parent=23 // pred_check
          %p243 = pneg %p116
        $region34: #{tpu_custom_call.1} parent=23 // pred_check_branch
          %245 = sbr.rel (%p243) target = $region36
        $region35: #{tpu_custom_call.1} parent=23 // pred_region
          %s246 = sadd.s32 %s22, 1
          %p247 = scmp.lt.s32.totalorder %s246, 0
          %s248 = scalar_select %p247, %s246, 0
          %p249 = scmp.lt.s32.totalorder %s21, 1
          %s250 = scalar_select %p249, %s21, 1
          %p251 = scmp.lt.s32.totalorder %s248, 0
          %s252 = scalar_select %p251, %s248, 0
          %s253 = sadd.s32 %s252, %s250
          %s254 = smul.addr %s253, 4
          %s255 = scalar_lea.vmem %s2, %s254
          %s256 = sadd.s32 %s22, 1
          %p257 = scmp.lt.s32.totalorder %s256, 0
          %s258 = scalar_select %p257, %s256, 0
        $region36: #{tpu_custom_call.1} parent=23 // pred_fallthru
          _
      $region24: #{tpu_custom_call.1} parent=5 // pred_fallthru
        _
      %p259 = scmp.le.s32.totalorder 1, %s14
      %p260 = scmp.lt.s32.totalorder %s14, 3
      %p261 = pnand %p259, %p260
      %p262 = pneg %p261
      // Predicated region
      $region37: #{tpu_custom_call.1} parent=5 // pred_check
        _
      $region38: #{tpu_custom_call.1} parent=5 // pred_check_branch
        %264 = sbr.rel (%p261) target = $region40
      $region39: #{tpu_custom_call.1} parent=5 // pred_region
        %s265 = ssub.s32 %s14, 1
        %p266 = scmp.lt.s32.totalorder %s23, 1
        %s267 = scalar_select %p266, %s23, 1
        %p268 = scmp.lt.s32.totalorder %s24, 0
        %s269 = scalar_select %p268, %s24, 0
        %s270 = sadd.s32 %s269, %s267
        %s271 = smul.addr %s270, 4
        %s272 = scalar_lea.vmem %s0, %s271
        %p273 = pneg %p54
        %p274 = pneg %p51
        %s275 = ssub.s32 %s24, 1
        %p276 = scmp.gt.s32.totalorder %s275, 0
        %s277 = scalar_select %p276, %s275, 0
        %p278 = scmp.lt.s32.totalorder %s23, 1
        %s279 = scalar_select %p278, %s23, 1
        %p280 = scmp.lt.s32.totalorder %s277, 0
        %s281 = scalar_select %p280, %s277, 0
        %s282 = sadd.s32 %s281, %s279
        %s283 = smul.addr %s282, 4
        %s284 = scalar_lea.vmem %s1, %s283
        %p285 = pneg %p88
        %p286 = pneg %p85
        %s287 = sadd.s32 %s24, 1
        %p288 = scmp.lt.s32.totalorder %s287, 0
        %s289 = scalar_select %p288, %s287, 0
        %p290 = scmp.lt.s32.totalorder %s23, 1
        %s291 = scalar_select %p290, %s23, 1
        %p292 = scmp.lt.s32.totalorder %s289, 0
        %s293 = scalar_select %p292, %s289, 0
        %s294 = sadd.s32 %s293, %s291
        %s295 = smul.addr %s294, 4
        %s296 = scalar_lea.vmem %s2, %s295
        %p297 = pneg %p122
        %p298 = pneg %p119
        %p299 = pneg %p143
        %p300 = pneg %p140
        %p301 = pneg %p164
        %p302 = pneg %p161
        %p303 = pneg %p192
        %p304 = pneg %p189
        %s305 = sand.u32 %s179, 1
        %s306 = scalar_lea.sflag [#allocation4], %s305
        %s307 = sand.u32 %s179, 1
        %s308 = smul.addr %s307, 8
        %s309 = scalar_lea.vmem [#allocation3], %s308
        %p310 = scmp.lt.s32.totalorder %s23, 1
        %s311 = scalar_select %p310, %s23, 1
        %p312 = scmp.lt.s32.totalorder %s24, 0
        %s313 = scalar_select %p312, %s24, 0
        %s314 = sadd.s32 %s313, %s311
        %s315 = smul.addr %s314, 4
        %s316 = scalar_lea.vmem %s0, %s315
        %s317 = ssub.s32 %s24, 1
        %p318 = scmp.gt.s32.totalorder %s317, 0
        %s319 = scalar_select %p318, %s317, 0
        %p320 = scmp.lt.s32.totalorder %s23, 1
        %s321 = scalar_select %p320, %s23, 1
        %p322 = scmp.lt.s32.totalorder %s319, 0
        %s323 = scalar_select %p322, %s319, 0
        %s324 = sadd.s32 %s323, %s321
        %s325 = smul.addr %s324, 4
        %s326 = scalar_lea.vmem %s1, %s325
        %s327 = ssub.s32 %s24, 1
        %p328 = scmp.gt.s32.totalorder %s327, 0
        %s329 = scalar_select %p328, %s327, 0
        %s330 = sadd.s32 %s24, 1
        %p331 = scmp.lt.s32.totalorder %s330, 0
        %s332 = scalar_select %p331, %s330, 0
        %p333 = scmp.lt.s32.totalorder %s23, 1
        %s334 = scalar_select %p333, %s23, 1
        %p335 = scmp.lt.s32.totalorder %s332, 0
        %s336 = scalar_select %p335, %s332, 0
        %s337 = sadd.s32 %s336, %s334
        %s338 = smul.addr %s337, 4
        %s339 = scalar_lea.vmem %s2, %s338
        %s340 = sadd.s32 %s24, 1
        %p341 = scmp.lt.s32.totalorder %s340, 0
        %s342 = scalar_select %p341, %s340, 0
        %s343 = smul.u32 %s24, 128
        %v344 = vld [vmem:[%s316] sm:$0xf]
        %345 = vst [vmem:[#allocation2 + $0x4] sm:$0xf] %v344
        %v346 = vld [vmem:[%s326] sm:$0xf]
        %347 = vst [vmem:[#allocation2] sm:$0xf] %v346
        %p348 = scmp.eq.s32.totalorder %s24, 0
        // Predicated region
        $region41: #{tpu_custom_call.1} parent=39 // pred_check
          %p349 = pneg %p348
        $region42: #{tpu_custom_call.1} parent=39 // pred_check_branch
          %351 = sbr.rel (%p349) target = $region44
        $region43: #{tpu_custom_call.1} parent=39 // pred_region
          %352 = vst [vmem:[#allocation2] sm:$0xf] 0.0
        $region44: #{tpu_custom_call.1} parent=39 // pred_fallthru
          _
        %v353 = vlaneseq
        %v354 = vand.u32 %v353, 127
        %s355 = sadd.s32 %s343, 128
        %v356 = vstv %s355
        %v357 = vadd.s32 %v356, %v354
        %vm358 = vcmp.lt.s32.totalorder %v357, 128
        %v359 = vld [vmem:[%s339] sm:$0xf]
        %v360 = vsel %vm358, %v359, 0.0
        %361 = vst [vmem:[#allocation2 + $0x8] sm:$0xf] %v360
        %p362 = scmp.gt.s32.totalorder %s355, 128
        // Predicated region
        $region45: #{tpu_custom_call.1} parent=39 // pred_check
          %p363 = pneg %p362
        $region46: #{tpu_custom_call.1} parent=39 // pred_check_branch
          %365 = sbr.rel (%p363) target = $region48
        $region47: #{tpu_custom_call.1} parent=39 // pred_region
          %v366 = vstv %s343
          %v367 = vadd.s32 %v366, %v354
          %vm368 = vcmp.lt.s32.totalorder %v367, 128
          %v369 = vld [vmem:[%s316] sm:$0xf]
          %v370 = vsel %vm368, %v369, 0.0
          %371 = vst [vmem:[#allocation2 + $0x4] sm:$0xf] %v370
        $region48: #{tpu_custom_call.1} parent=39 // pred_fallthru
          _
        %v372 = vld [vmem:[%s3] sm:$0xff]
        %v373 = vld [vmem:[#allocation2] sm:$0xff]
        %s374 = scalar_lea.vmem %s3, 8
        %v375 = vld [vmem:[%s374] sm:$0xff]
        %v376 = vld [vmem:[#allocation2 + $0x4] sm:$0xf]
        %vm377 = vcmask 31744
        %v379 = vsel %vm377, %v375, 0
        %vm381 = vcmask 1043456
        %v383 = vsel %vm381, %v376, 0
        %385 = vmatprep.subr.mxu0 0.0
        %386 = vmatpush1.msra.mxu0 %v383
        %387 = vmatprep.subr.mxu0 0.0
        %388 = vmatpush1.msra.mxu0 0.0
        %389 = vmatprep.subr.mxu0 0.0
        %390 = vmatpush1.msra.mxu0 0.0
        %391 = vmatprep.subr.mxu0 0.0
        %392 = vmatpush1.msra.mxu0 0.0
        %393 = vmatprep.subr.mxu0 0.0
        %394 = vmatpush1.msra.mxu0 0.0
        %395 = vmatprep.subr.mxu0 0.0
        %396 = vmatpush1.msra.mxu0 0.0
        %397 = vmatprep.subr.mxu0 0.0
        %398 = vmatpush1.msra.mxu0 0.0
        %399 = vmatprep.subr.mxu0 0.0
        %400 = vmatpush1.msra.mxu0 0.0
        %401 = vmatprep.subr.mxu0 0.0
        %402 = vmatpush1.msra.mxu0 0.0
        %403 = vmatprep.subr.mxu0 0.0
        %404 = vmatpush1.msra.mxu0 0.0
        %405 = vmatprep.subr.mxu0 0.0
        %406 = vmatpush1.msra.mxu0 0.0
        %407 = vmatprep.subr.mxu0 0.0
        %408 = vmatpush1.msra.mxu0 0.0
        %409 = vmatprep.subr.mxu0 0.0
        %410 = vmatpush1.msra.mxu0 0.0
        %411 = vmatprep.subr.mxu0 0.0
        %412 = vmatpush1.msra.mxu0 0.0
        %413 = vmatprep.subr.mxu0 0.0
        %414 = vmatpush1.msra.mxu0 0.0
        %415 = vmatprep.subr.mxu0 0.0
        %416 = vmatpush1.msra.mxu0 0.0
        %417 = vmatprep.subr.mxu0 0.0
        %418 = vmatpush1.msra.mxu0 0.0
        %419 = vmatprep.subr.mxu0 0.0
        %420 = vmatpush1.msra.mxu0 0.0
        %421 = vmatprep.subr.mxu0 0.0
        %422 = vmatpush1.msra.mxu0 0.0
        %423 = vmatprep.subr.mxu0 0.0
        %424 = vmatpush1.msra.mxu0 0.0
        %425 = vmatprep.subr.mxu0 0.0
        %426 = vmatpush1.msra.mxu0 0.0
        %427 = vmatprep.subr.mxu0 0.0
        %428 = vmatpush1.msra.mxu0 0.0
        %429 = vmatprep.subr.mxu0 0.0
        %430 = vmatpush1.msra.mxu0 0.0
        %431 = vmatprep.subr.mxu0 0.0
        %432 = vmatpush1.msra.mxu0 0.0
        %433 = vmatprep.subr.mxu0 0.0
        %434 = vmatpush1.msra.mxu0 0.0
        %435 = vmatprep.subr.mxu0 0.0
        %436 = vmatpush1.msra.mxu0 0.0
        %437 = vmatprep.subr.mxu0 0.0
        %438 = vmatpush1.msra.mxu0 0.0
        %439 = vmatprep.subr.mxu0 0.0
        %440 = vmatpush1.msra.mxu0 0.0
        %441 = vmatprep.subr.mxu0 0.0
        %442 = vmatpush1.msra.mxu0 0.0
        %443 = vmatprep.subr.mxu0 0.0
        %444 = vmatpush1.msra.mxu0 0.0
        %445 = vmatprep.subr.mxu0 0.0
        %446 = vmatpush1.msra.mxu0 0.0
        %447 = vmatprep.subr.mxu0 0.0
        %448 = vmatpush1.msra.mxu0 0.0
        %449 = vmatprep.mubr.f32.mxu0 0.0
        %450 = vmatmul.mubr.f32.gmra.mrb[0].mxu0 %v379
        %v451 = vpop.f32.mrb[0].mxu0
        %v452 = vadd.f32 0.0, %v451
        %v453 = vpop.f32.mrb[0].mxu0
        %454 = vdwg.mxu0
        %v456 = vcombine.high %v373, %v373
        %457 = vrot.lane.b32.xlu0 %v373, 1
        %v458 = vpop.permute.xlu0 %457
        %459 = vrot.lane.b32.xlu0 %v456, 1
        %v460 = vpop.permute.xlu0 %459
        %vm461 = vcmask 7168
        %v462 = vsel %vm461, %v458, %v460
        %v464 = vsel %vm377, %v372, 0
        %v466 = vsel %vm381, %v462, 0
        %468 = vmatprep.subr.mxu0 0.0
        %469 = vmatpush1.msra.mxu0 %v466
        %470 = vmatprep.subr.mxu0 0.0
        %471 = vmatpush1.msra.mxu0 0.0
        %472 = vmatprep.subr.mxu0 0.0
        %473 = vmatpush1.msra.mxu0 0.0
        %474 = vmatprep.subr.mxu0 0.0
        %475 = vmatpush1.msra.mxu0 0.0
        %476 = vmatprep.subr.mxu0 0.0
        %477 = vmatpush1.msra.mxu0 0.0
        %478 = vmatprep.subr.mxu0 0.0
        %479 = vmatpush1.msra.mxu0 0.0
        %480 = vmatprep.subr.mxu0 0.0
        %481 = vmatpush1.msra.mxu0 0.0
        %482 = vmatprep.subr.mxu0 0.0
        %483 = vmatpush1.msra.mxu0 0.0
        %484 = vmatprep.subr.mxu0 0.0
        %485 = vmatpush1.msra.mxu0 0.0
        %486 = vmatprep.subr.mxu0 0.0
        %487 = vmatpush1.msra.mxu0 0.0
        %488 = vmatprep.subr.mxu0 0.0
        %489 = vmatpush1.msra.mxu0 0.0
        %490 = vmatprep.subr.mxu0 0.0
        %491 = vmatpush1.msra.mxu0 0.0
        %492 = vmatprep.subr.mxu0 0.0
        %493 = vmatpush1.msra.mxu0 0.0
        %494 = vmatprep.subr.mxu0 0.0
        %495 = vmatpush1.msra.mxu0 0.0
        %496 = vmatprep.subr.mxu0 0.0
        %497 = vmatpush1.msra.mxu0 0.0
        %498 = vmatprep.subr.mxu0 0.0
        %499 = vmatpush1.msra.mxu0 0.0
        %500 = vmatprep.subr.mxu0 0.0
        %501 = vmatpush1.msra.mxu0 0.0
        %502 = vmatprep.subr.mxu0 0.0
        %503 = vmatpush1.msra.mxu0 0.0
        %504 = vmatprep.subr.mxu0 0.0
        %505 = vmatpush1.msra.mxu0 0.0
        %506 = vmatprep.subr.mxu0 0.0
        %507 = vmatpush1.msra.mxu0 0.0
        %508 = vmatprep.subr.mxu0 0.0
        %509 = vmatpush1.msra.mxu0 0.0
        %510 = vmatprep.subr.mxu0 0.0
        %511 = vmatpush1.msra.mxu0 0.0
        %512 = vmatprep.subr.mxu0 0.0
        %513 = vmatpush1.msra.mxu0 0.0
        %514 = vmatprep.subr.mxu0 0.0
        %515 = vmatpush1.msra.mxu0 0.0
        %516 = vmatprep.subr.mxu0 0.0
        %517 = vmatpush1.msra.mxu0 0.0
        %518 = vmatprep.subr.mxu0 0.0
        %519 = vmatpush1.msra.mxu0 0.0
        %520 = vmatprep.subr.mxu0 0.0
        %521 = vmatpush1.msra.mxu0 0.0
        %522 = vmatprep.subr.mxu0 0.0
        %523 = vmatpush1.msra.mxu0 0.0
        %524 = vmatprep.subr.mxu0 0.0
        %525 = vmatpush1.msra.mxu0 0.0
        %526 = vmatprep.subr.mxu0 0.0
        %527 = vmatpush1.msra.mxu0 0.0
        %528 = vmatprep.subr.mxu0 0.0
        %529 = vmatpush1.msra.mxu0 0.0
        %530 = vmatprep.subr.mxu0 0.0
        %531 = vmatpush1.msra.mxu0 0.0
        %532 = vmatprep.mubr.f32.mxu0 0.0
        %533 = vmatmul.mubr.f32.gmra.mrb[0].mxu0 %v464
        %v534 = vpop.f32.mrb[0].mxu0
        %v535 = vadd.f32 %v452, %v534
        %v536 = vpop.f32.mrb[0].mxu0
        %537 = vdwg.mxu0
        %s538 = scalar_lea.vmem %s3, 16
        %v539 = vld [vmem:[%s538] sm:$0xff]
        %v540 = vld [vmem:[#allocation2 + $0x4] sm:$0xff]
        %v542 = vcombine.high %v540, %v540
        %543 = vrot.lane.b32.xlu0 %v540, 127
        %v544 = vpop.permute.xlu0 %543
        %545 = vrot.lane.b32.xlu0 %v542, 127
        %v546 = vpop.permute.xlu0 %545
        %vm547 = vcmask 1039360
        %v548 = vsel %vm547, %v544, %v546
        %v550 = vsel %vm377, %v539, 0
        %v552 = vsel %vm381, %v548, 0
        %554 = vmatprep.subr.mxu0 0.0
        %555 = vmatpush1.msra.mxu0 %v552
        %556 = vmatprep.subr.mxu0 0.0
        %557 = vmatpush1.msra.mxu0 0.0
        %558 = vmatprep.subr.mxu0 0.0
        %559 = vmatpush1.msra.mxu0 0.0
        %560 = vmatprep.subr.mxu0 0.0
        %561 = vmatpush1.msra.mxu0 0.0
        %562 = vmatprep.subr.mxu0 0.0
        %563 = vmatpush1.msra.mxu0 0.0
        %564 = vmatprep.subr.mxu0 0.0
        %565 = vmatpush1.msra.mxu0 0.0
        %566 = vmatprep.subr.mxu0 0.0
        %567 = vmatpush1.msra.mxu0 0.0
        %568 = vmatprep.subr.mxu0 0.0
        %569 = vmatpush1.msra.mxu0 0.0
        %570 = vmatprep.subr.mxu0 0.0
        %571 = vmatpush1.msra.mxu0 0.0
        %572 = vmatprep.subr.mxu0 0.0
        %573 = vmatpush1.msra.mxu0 0.0
        %574 = vmatprep.subr.mxu0 0.0
        %575 = vmatpush1.msra.mxu0 0.0
        %576 = vmatprep.subr.mxu0 0.0
        %577 = vmatpush1.msra.mxu0 0.0
        %578 = vmatprep.subr.mxu0 0.0
        %579 = vmatpush1.msra.mxu0 0.0
        %580 = vmatprep.subr.mxu0 0.0
        %581 = vmatpush1.msra.mxu0 0.0
        %582 = vmatprep.subr.mxu0 0.0
        %583 = vmatpush1.msra.mxu0 0.0
        %584 = vmatprep.subr.mxu0 0.0
        %585 = vmatpush1.msra.mxu0 0.0
        %586 = vmatprep.subr.mxu0 0.0
        %587 = vmatpush1.msra.mxu0 0.0
        %588 = vmatprep.subr.mxu0 0.0
        %589 = vmatpush1.msra.mxu0 0.0
        %590 = vmatprep.subr.mxu0 0.0
        %591 = vmatpush1.msra.mxu0 0.0
        %592 = vmatprep.subr.mxu0 0.0
        %593 = vmatpush1.msra.mxu0 0.0
        %594 = vmatprep.subr.mxu0 0.0
        %595 = vmatpush1.msra.mxu0 0.0
        %596 = vmatprep.subr.mxu0 0.0
        %597 = vmatpush1.msra.mxu0 0.0
        %598 = vmatprep.subr.mxu0 0.0
        %599 = vmatpush1.msra.mxu0 0.0
        %600 = vmatprep.subr.mxu0 0.0
        %601 = vmatpush1.msra.mxu0 0.0
        %602 = vmatprep.subr.mxu0 0.0
        %603 = vmatpush1.msra.mxu0 0.0
        %604 = vmatprep.subr.mxu0 0.0
        %605 = vmatpush1.msra.mxu0 0.0
        %606 = vmatprep.subr.mxu0 0.0
        %607 = vmatpush1.msra.mxu0 0.0
        %608 = vmatprep.subr.mxu0 0.0
        %609 = vmatpush1.msra.mxu0 0.0
        %610 = vmatprep.subr.mxu0 0.0
        %611 = vmatpush1.msra.mxu0 0.0
        %612 = vmatprep.subr.mxu0 0.0
        %613 = vmatpush1.msra.mxu0 0.0
        %614 = vmatprep.subr.mxu0 0.0
        %615 = vmatpush1.msra.mxu0 0.0
        %616 = vmatprep.subr.mxu0 0.0
        %617 = vmatpush1.msra.mxu0 0.0
        %618 = vmatprep.mubr.f32.mxu0 0.0
        %619 = vmatmul.mubr.f32.gmra.mrb[0].mxu0 %v550
        %v620 = vpop.f32.mrb[0].mxu0
        %v621 = vadd.f32 0.0, %v620
        %v622 = vpop.f32.mrb[0].mxu0
        %623 = vdwg.mxu0
        %v624 = vadd.f32 %v535, %v621
        %v625 = vld [vmem:[%s4] sm:$0xff]
        %627 = vset.pattern.permute.xlu0 0
        %628 = vperm.xlu0 %627, %v625
        %v629 = vpop.permute.xlu0 %628
        %v631 = vadd.f32 %v624, %v629
        %632 = vst [vmem:[%s309] sm:$0xff] %v631
        %s633 = sand.u32 %s179, 1
        %s634 = scalar_lea.sflag [#allocation4], %s633
        %s635 = sand.u32 %s179, 1
        %s636 = smul.addr %s635, 8
        %s637 = scalar_lea.vmem [#allocation3], %s636
        // Predicated region
        $region49: #{tpu_custom_call.1} parent=39 // pred_check
          %p638 = pneg %p189
        $region50: #{tpu_custom_call.1} parent=39 // pred_check_branch
          %640 = sbr.rel (%p638) target = $region52
        $region51: #{tpu_custom_call.1} parent=39 // pred_region
          %s642 = ssub.s32 128, 128
          %643 = vsyncadd %s634, %s642
          %s644 = sadd.s32 %s24, %s23
          %s645 = smul.addr %s644, 128
          %s646 = scalar_lea.hbm %s5, %s645
          %s648 = sshll.u32 %s637, 4
          %s649 = int_to_ptr.vmem [resolvable:$true] %s648
          %651 = dma.vmem_to_hbm [thread:$0]  %s649, 128, %s646, %s634
        $region52: #{tpu_custom_call.1} parent=39 // pred_fallthru
          _
      $region40: #{tpu_custom_call.1} parent=5 // pred_fallthru
        _
      %p652 = scmp.le.s32.totalorder 2, %s14
      // Predicated region
      $region53: #{tpu_custom_call.1} parent=5 // pred_check
        %p653 = pneg %p652
      $region54: #{tpu_custom_call.1} parent=5 // pred_check_branch
        %655 = sbr.rel (%p653) target = $region56
      $region55: #{tpu_custom_call.1} parent=5 // pred_region
        %s656 = ssub.s32 %s14, 2
        // Predicated region
        $region57: #{tpu_custom_call.1} parent=55 // pred_check
          %p657 = pneg %p195
        $region58: #{tpu_custom_call.1} parent=55 // pred_check_branch
          %659 = sbr.rel (%p657) target = $region60
        $region59: #{tpu_custom_call.1} parent=55 // pred_region
          %s660 = sand.u32 %s180, 1
          %s661 = scalar_lea.sflag [#allocation4], %s660
          %s662 = sand.u32 %s180, 1
          %s663 = smul.addr %s662, 8
          %s664 = scalar_lea.vmem [#allocation3], %s663
          %665 = dma.done %s661, 128
        $region60: #{tpu_custom_call.1} parent=55 // pred_fallthru
          _
      $region56: #{tpu_custom_call.1} parent=5 // pred_fallthru
        _
    $region6: #{tpu_custom_call.1} parent=1 // loop_footer
      %s18 = sadd.s32 1, %s14
    $region7: #{tpu_custom_call.1} parent=1 // loop_footer_branch
      %13 = sbr.rel target = $region3
    $region8: #{tpu_custom_call.1} parent=1 // loop_exit
      _
    %666 = vsyncpa [#allocation4], 1
    %s667 = scalar_lea.sflag [#allocation4], 1
    %668 = vsyncpa %s667, 1

</llo_original>
